<compile_context>
chip_gen: v7x
topology: tpu7x:2x2x1
jax: 0.10.0
libtpu: 0.0.40
codegen_flags: <defaults>
</compile_context>

<pallas_src>
import functools

import jax
import jax.numpy as jnp
from jax.experimental import pallas as pl
from jax.experimental.pallas import tpu as pltpu

_OUT_P = 128  # lane-dense padded width of the final (hidden -> 1) layer


def _round_up(x, m):
    return (x + m - 1) // m * m


def _nbytes(a):
    return int(a.size) * int(a.dtype.itemsize)


# ----------------------------- Pallas kernel -------------------------------
def _mlp_kernel(n_hidden, activation, epi_dtype,
                x_ref, w_in_ref, b_in_ref, w_h_ref, b_h_ref,
                w_out_ref, b_out_ref, o_ref):
    """One (TB, d_in_p) batch tile through the whole MLP; weights VMEM-resident."""
    mxu_dtype = w_in_ref.dtype  # bf16 operands, f32 accumulation

    def act(h):
        if activation == "relu":
            return jax.nn.relu(h)
        if activation == "gelu":
            return jax.nn.gelu(h)      # tanh approx (see TODO above)
        if activation == "sigmoid":
            return jax.nn.sigmoid(h)
        raise ValueError(activation)

    def layer(h, w, b):
        acc = jnp.dot(h.astype(mxu_dtype), w, preferred_element_type=jnp.float32)
        return act(acc.astype(epi_dtype) + b)

    # Input layer (x_ref is already bf16).
    h = layer(x_ref[...], w_in_ref[...], b_in_ref[...])

    # Hidden layers.  Dropout = identity (eval); BatchNorm scale/shift already
    # folded into the NEXT layer's weight/bias at pack time.
    if n_hidden <= 4:
        for i in range(n_hidden):
            h = layer(h, w_h_ref[i], b_h_ref[i])
    else:
        # Bound live ranges for deep stacks instead of a huge static unroll.
        h = jax.lax.fori_loop(
            0, n_hidden, lambda i, hh: layer(hh, w_h_ref[i], b_h_ref[i]), h)

    # Output layer, lane-dense: (TB, H_p) @ (H_p, 128) + (1, 128), bf16 store.
    acc = jnp.dot(h.astype(mxu_dtype), w_out_ref[...],
                  preferred_element_type=jnp.float32)
    o_ref[...] = (acc + b_out_ref[...]).astype(o_ref.dtype)


# --------------------------- tiling / VMEM helpers ---------------------------
def _choose_batch_tiling(B):
    """Pick (tb, b_pad): >=2 (preferably even) grid steps with minimal padding."""
    B = max(int(B), 1)
    if B <= 128:
        tb = _round_up(B, 16)   # bf16 sublane granularity; grid = 1 unavoidable
        return tb, tb
    best_key, best = None, None
    for tb in (128, 256, 512):
        b_pad = _round_up(B, tb)
        steps = b_pad // tb
        waste = b_pad - B
        key = (waste, 0 if steps >= 2 else 1, steps % 2, -tb)
        if best_key is None or key < best_key:
            best_key, best = key, (tb, b_pad)
    return best


def _vmem_cap_bytes():
    try:
        cap = int(pltpu.get_tpu_info().vmem_capacity_bytes)
    except Exception:
        cap = 64 << 20
    # Leave headroom for compiler-internal scratch (critical on v7x's 64 MiB);
    # allow up to ~100 MiB on 128 MiB parts (v5e / v6e).
    return min(max(cap - (12 << 20), (cap * 3) // 4), 100 << 20)


def _default_epi_dtype():
    """bf16 epilogue on chips with a bf16 VPU/EUP (v6e, v7x); f32 otherwise."""
    try:
        kind = jax.devices()[0].device_kind.lower()
    except Exception:
        return jnp.float32
    if "v6" in kind or "v7" in kind:
        return jnp.bfloat16
    return jnp.float32


# ------------------------------ JAX wrapper ---------------------------------
def mlp_forward(x, packed, *, n_hidden, activation):
    """x: (B, input_size) float32.  packed: padded/packed kernel params."""
    B, d_in = x.shape
    d_in_p, h_p = packed["w_in"].shape
    L = packed["w_h"].shape[0]
    out_p = packed["w_out"].shape[1]
    mxu_dtype = packed["w_in"].dtype
    epi_dtype = packed["b_in"].dtype

    cap = _vmem_cap_bytes()
    tb, b_pad = _choose_batch_tiling(B)

    # Single-buffered resident weights + biases.
    w_bytes = sum(_nbytes(packed[k])
                  for k in ("w_in", "w_h", "w_out", "b_in", "b_h", "b_out"))

    def vmem_need(tb_):
        stream = 2 * tb_ * d_in_p * 2 + 2 * tb_ * out_p * 2   # bf16 x/out, 2-buffered
        temps = 4 * tb_ * h_p * 4                             # f32 activation temporaries
        return w_bytes + stream + temps + (4 << 20)

    while tb > 16 and vmem_need(tb) > cap:                    # shrink tile if needed
        tb = max(16, _round_up(tb // 2, 16))
        b_pad = _round_up(B, tb)

    vmem_limit = int(min(max(vmem_need(tb), 16 << 20), cap))

    # Pad batch rows and stream x in bf16 (the MXU operand dtype) directly.
    x_p = (jnp.zeros((b_pad, d_in_p), mxu_dtype)
           .at[:B, :d_in].set(x.astype(mxu_dtype)))

    kernel = functools.partial(_mlp_kernel, n_hidden, activation, epi_dtype)

    flops = 2 * b_pad * (d_in_p * h_p + n_hidden * h_p * h_p + h_p * out_p)
    transcendentals = 0 if activation == "relu" else b_pad * h_p * (n_hidden + 1)
    bytes_accessed = _nbytes(x_p) + w_bytes + b_pad * out_p * 2

    def build(single_buffer_weights):
        def const_spec(shape, imap):
            if single_buffer_weights:
                return pl.BlockSpec(shape, imap, pipeline_mode=pl.Buffered(1))
            return pl.BlockSpec(shape, imap)

        return pl.pallas_call(
            kernel,
            out_shape=jax.ShapeDtypeStruct((b_pad, out_p), jnp.bfloat16),
            grid_spec=pltpu.PrefetchScalarGridSpec(
                num_scalar_prefetch=0,
                grid=(b_pad // tb,),
                in_specs=[
                    pl.BlockSpec((tb, d_in_p), lambda i: (i, 0)),      # x (streamed)
                    const_spec((d_in_p, h_p), lambda i: (0, 0)),       # w_in
                    const_spec((1, h_p), lambda i: (0, 0)),            # b_in
                    const_spec((L, h_p, h_p), lambda i: (0, 0, 0)),    # w_h (BN-scaled)
                    const_spec((L, 1, h_p), lambda i: (0, 0, 0)),      # b_h (BN-shifted)
                    const_spec((h_p, out_p), lambda i: (0, 0)),        # w_out
                    const_spec((1, out_p), lambda i: (0, 0)),          # b_out
                ],
                out_specs=pl.BlockSpec((tb, out_p), lambda i: (i, 0)),
            ),
            compiler_params=pltpu.CompilerParams(
                dimension_semantics=("parallel",),   # shard batch grid across TCs
                vmem_limit_bytes=vmem_limit,
            ),
            cost_estimate=pl.CostEstimate(
                flops=flops, transcendentals=transcendentals,
                bytes_accessed=bytes_accessed),
        )

    args = (x_p, packed["w_in"], packed["b_in"], packed["w_h"],
            packed["b_h"], packed["w_out"], packed["b_out"])
    try:
        out = build(True)(*args)
    except Exception:
        # Fallback if this JAX build rejects single-buffering via Buffered(1).
        out = build(False)(*args)

    return out[:B, :1].astype(jnp.float32)


# ------------------------ deterministic param init --------------------------
def init_params(key, input_size, hidden_size, n_hidden):
    """PyTorch-shaped f32 params (eval mode) with non-trivial BatchNorm running
    statistics so the BN-folding path is actually exercised."""
    keys = iter(jax.random.split(key, 8 + 6 * max(n_hidden, 1)))
    s_in = 1.0 / jnp.sqrt(input_size)
    s_h = 1.0 / jnp.sqrt(hidden_size)

    def u(k, shape, lo, hi):
        return jax.random.uniform(k, shape, jnp.float32, lo, hi)

    w_in = u(next(keys), (input_size, hidden_size), -s_in, s_in)
    b_in = u(next(keys), (1, hidden_size), -s_in, s_in)

    w_h, b_h, gamma, beta, r_mean, r_var = [], [], [], [], [], []
    for _ in range(n_hidden):
        w_h.append(u(next(keys), (hidden_size, hidden_size), -s_h, s_h))
        b_h.append(u(next(keys), (1, hidden_size), -s_h, s_h))
        gamma.append(u(next(keys), (1, hidden_size), 0.8, 1.2))
        beta.append(u(next(keys), (1, hidden_size), -0.2, 0.2))
        r_mean.append(u(next(keys), (1, hidden_size), -0.3, 0.3))
        r_var.append(u(next(keys), (1, hidden_size), 0.5, 1.5))

    def stack(lst, shape):
        return jnp.stack(lst) if lst else jnp.zeros((0,) + shape, jnp.float32)

    eps = 1e-5
    g = stack(gamma, (1, hidden_size))
    bt = stack(beta, (1, hidden_size))
    rm = stack(r_mean, (1, hidden_size))
    rv = stack(r_var, (1, hidden_size))
    bn_scale = g * jax.lax.rsqrt(rv + eps)
    bn_shift = bt - rm * bn_scale

    w_out = u(next(keys), (hidden_size, 1), -s_h, s_h)
    b_out = u(next(keys), (1, 1), -s_h, s_h)

    return dict(w_in=w_in, b_in=b_in,
                w_h=stack(w_h, (hidden_size, hidden_size)),
                b_h=stack(b_h, (1, hidden_size)),
                bn_scale=bn_scale, bn_shift=bn_shift,
                w_out=w_out, b_out=b_out)


def pack_params(p, n_hidden, mxu_dtype=jnp.bfloat16, epi_dtype=jnp.float32):
    """Fold eval-mode BatchNorm into the next layer, zero-pad to lane-native
    widths, cast weights to bf16 and biases to the epilogue dtype."""
    d_in, h = p["w_in"].shape
    d_in_p = _round_up(d_in, 16)    # bf16 sublane granularity; no 128-pad of K
    h_p = _round_up(h, 128)
    L = max(n_hidden, 1)

    # Fold BN (y = a*s + t, applied after hidden layer i) into the NEXT layer:
    #   (a*s + t) @ W + b  ==  a @ (s^T * W) + (t @ W + b)
    # Done BEFORE zero-padding so padded weight rows stay exactly zero.
    w_h = [p["w_h"][i] for i in range(n_hidden)]
    b_h = [p["b_h"][i] for i in range(n_hidden)]
    w_out, b_out = p["w_out"], p["b_out"]
    for i in range(n_hidden):
        s = p["bn_scale"][i].reshape(h, 1)
        t = p["bn_shift"][i]                       # (1, h)
        if i + 1 < n_hidden:
            b_h[i + 1] = b_h[i + 1] + t @ w_h[i + 1]
            w_h[i + 1] = s * w_h[i + 1]
        else:
            b_out = b_out + t @ w_out
            w_out = s * w_out

    def pad2(a, rows, cols, dtype):
        out = jnp.zeros((rows, cols), jnp.float32)
        return out.at[:a.shape[0], :a.shape[1]].set(a).astype(dtype)

    w_in_p = pad2(p["w_in"], d_in_p, h_p, mxu_dtype)
    b_in_p = pad2(p["b_in"], 1, h_p, epi_dtype)

    w_h_p = jnp.zeros((L, h_p, h_p), mxu_dtype)
    b_h_p = jnp.zeros((L, 1, h_p), epi_dtype)
    for i in range(n_hidden):
        w_h_p = w_h_p.at[i].set(pad2(w_h[i], h_p, h_p, mxu_dtype))
        b_h_p = b_h_p.at[i].set(pad2(b_h[i], 1, h_p, epi_dtype))

    w_out_p = pad2(w_out, h_p, _OUT_P, mxu_dtype)
    b_out_p = pad2(b_out, 1, _OUT_P, jnp.float32)

    return dict(w_in=w_in_p, b_in=b_in_p, w_h=w_h_p, b_h=b_h_p,
                w_out=w_out_p, b_out=b_out_p)


# --------------------------- pure-JAX references ------------------------------
def mlp_reference(x, p, *, n_hidden, activation):
    """Eval-mode f32 semantics of the PyTorch module (Dropout = identity)."""
    act = {"relu": jax.nn.relu, "gelu": jax.nn.gelu,
           "sigmoid": jax.nn.sigmoid}[activation]
    h = act(x @ p["w_in"] + p["b_in"])
    for i in range(n_hidden):
        h = act(h @ p["w_h"][i] + p["b_h"][i])
        h = h * p["bn_scale"][i] + p["bn_shift"][i]
    return h @ p["w_out"] + p["b_out"]


def mlp_reference_packed(x, packed, *, n_hidden, activation):
    """Pure-JAX mirror of the kernel's exact math (bf16 MXU, folded BN, bf16 out)."""
    act = {"relu": jax.nn.relu, "gelu": jax.nn.gelu,
           "sigmoid": jax.nn.sigmoid}[activation]
    mxu = packed["w_in"].dtype
    epi = packed["b_in"].dtype
    d_in_p = packed["w_in"].shape[0]
    B, d_in = x.shape
    xb = jnp.zeros((B, d_in_p), mxu).at[:, :d_in].set(x.astype(mxu))

    def layer(h, w, b):
        acc = jnp.dot(h.astype(mxu), w, preferred_element_type=jnp.float32)
        return act(acc.astype(epi) + b)

    h = layer(xb, packed["w_in"], packed["b_in"])
    for i in range(n_hidden):
        h = layer(h, packed["w_h"][i], packed["b_h"][i])
    acc = jnp.dot(h.astype(mxu), packed["w_out"], preferred_element_type=jnp.float32)
    out = (acc + packed["b_out"]).astype(jnp.bfloat16)
    return out[:, :1].astype(jnp.float32)


if __name__ == "__main__":
    # MLPBase(input_size=32, hidden_size=32, dropout=0.1, n_hidden=2,
    #         activation='relu', use_batch_norm=True), eval mode.
    B, INPUT_SIZE, HIDDEN_SIZE, N_HIDDEN = 8, 32, 32, 2
    ACTIVATION = "relu"

    key = jax.random.PRNGKey(0)
    kx, kp = jax.random.split(key)
    x = jax.random.normal(kx, (B, INPUT_SIZE), jnp.float32)

    raw = init_params(kp, INPUT_SIZE, HIDDEN_SIZE, N_HIDDEN)
    packed = pack_params(raw, N_HIDDEN, epi_dtype=_default_epi_dtype())

    out = mlp_forward(x, packed, n_hidden=N_HIDDEN, activation=ACTIVATION)
    out = jax.block_until_ready(out)
    assert out.shape == (B, 1)

    # Kernel-math mirror (same dtypes / BN fold / bf16 writeback): tight check.
    ref_mirror = mlp_reference_packed(x, packed, n_hidden=N_HIDDEN,
                                      activation=ACTIVATION)
    assert jnp.allclose(out, ref_mirror, atol=2e-3, rtol=2e-3)

    # Full-f32 eval-mode semantics: loose check (bf16 MXU operands / bf16 out).
    ref_f32 = mlp_reference(x, raw, n_hidden=N_HIDDEN, activation=ACTIVATION)
    assert jnp.allclose(out, ref_f32, atol=3e-2, rtol=3e-2)

    print("KERNEL_OK")
</pallas_src>

<mosaic_0001>
module attributes {stable_mosaic.version = 11 : i64} {
  func.func @_mlp_kernel(%arg0: i32, %arg1: memref<16x32xbf16, #tpu.memory_space<vmem>>, %arg2: memref<32x128xbf16, #tpu.memory_space<vmem>>, %arg3: memref<1x128xf32, #tpu.memory_space<vmem>>, %arg4: memref<2x128x128xbf16, #tpu.memory_space<vmem>>, %arg5: memref<2x1x128xf32, #tpu.memory_space<vmem>>, %arg6: memref<128x128xbf16, #tpu.memory_space<vmem>>, %arg7: memref<1x128xf32, #tpu.memory_space<vmem>>, %arg8: memref<16x128xbf16, #tpu.memory_space<vmem>>) attributes {dimension_semantics = [#tpu.dimension_semantics<parallel>], iteration_bounds = array<i64: 1>, scalar_prefetch = 0 : i64, scratch_operands = 0 : i64, tpu.core_type = #tpu.core_type<tc>, window_params = [{transform_indices = @transform_0, window_bounds = array<i64: 16, 32>}, {pipeline_mode = #tpu.pipeline_mode<synchronous>, transform_indices = @transform_1, window_bounds = array<i64: 32, 128>}, {pipeline_mode = #tpu.pipeline_mode<synchronous>, transform_indices = @transform_2, window_bounds = array<i64: 1, 128>}, {pipeline_mode = #tpu.pipeline_mode<synchronous>, transform_indices = @transform_3, window_bounds = array<i64: 2, 128, 128>}, {pipeline_mode = #tpu.pipeline_mode<synchronous>, transform_indices = @transform_4, window_bounds = array<i64: 2, 1, 128>}, {pipeline_mode = #tpu.pipeline_mode<synchronous>, transform_indices = @transform_5, window_bounds = array<i64: 128, 128>}, {pipeline_mode = #tpu.pipeline_mode<synchronous>, transform_indices = @transform_6, window_bounds = array<i64: 1, 128>}, {transform_indices = @transform_7, window_bounds = array<i64: 16, 128>}]} {
    %c0 = arith.constant 0 : index
    %c0_0 = arith.constant 0 : index
    %0 = vector.load %arg1[%c0, %c0_0] : memref<16x32xbf16, #tpu.memory_space<vmem>>, vector<16x32xbf16>
    %c0_1 = arith.constant 0 : index
    %c0_2 = arith.constant 0 : index
    %1 = vector.load %arg2[%c0_1, %c0_2] : memref<32x128xbf16, #tpu.memory_space<vmem>>, vector<32x128xbf16>
    %c0_3 = arith.constant 0 : index
    %c0_4 = arith.constant 0 : index
    %2 = vector.load %arg3[%c0_3, %c0_4] : memref<1x128xf32, #tpu.memory_space<vmem>>, vector<1x128xf32>
    %cst = arith.constant dense<0.000000e+00> : vector<16x128xf32>
    %3 = tpu.matmul %0, %1, %cst {dimension_numbers = #tpu.dot_dimension_numbers<[1], [0], [0], [1], [0, 0, 1, 1], [], []>} : vector<16x32xbf16>, vector<32x128xbf16>, vector<16x128xf32> -> vector<16x128xf32>
    %4 = vector.broadcast %2 : vector<1x128xf32> to vector<16x128xf32>
    %5 = arith.addf %3, %4 : vector<16x128xf32>
    %cst_5 = arith.constant 0.000000e+00 : f32
    %6 = vector.broadcast %cst_5 : f32 to vector<16x128xf32>
    %7 = arith.maximumf %5, %6 : vector<16x128xf32>
    %c0_6 = arith.constant 0 : index
    %c0_7 = arith.constant 0 : index
    %c0_8 = arith.constant 0 : index
    %8 = vector.load %arg4[%c0_6, %c0_7, %c0_8] : memref<2x128x128xbf16, #tpu.memory_space<vmem>>, vector<1x128x128xbf16>
    %9 = vector.shape_cast %8 : vector<1x128x128xbf16> to vector<128x128xbf16>
    %c0_9 = arith.constant 0 : index
    %c0_10 = arith.constant 0 : index
    %c0_11 = arith.constant 0 : index
    %10 = vector.load %arg5[%c0_9, %c0_10, %c0_11] : memref<2x1x128xf32, #tpu.memory_space<vmem>>, vector<1x1x128xf32>
    %11 = vector.shape_cast %10 : vector<1x1x128xf32> to vector<1x128xf32>
    %12 = arith.truncf %7 : vector<16x128xf32> to vector<16x128xbf16>
    %cst_12 = arith.constant dense<0.000000e+00> : vector<16x128xf32>
    %13 = tpu.matmul %12, %9, %cst_12 {dimension_numbers = #tpu.dot_dimension_numbers<[1], [0], [0], [1], [0, 0, 1, 1], [], []>} : vector<16x128xbf16>, vector<128x128xbf16>, vector<16x128xf32> -> vector<16x128xf32>
    %14 = vector.broadcast %11 : vector<1x128xf32> to vector<16x128xf32>
    %15 = arith.addf %13, %14 : vector<16x128xf32>
    %cst_13 = arith.constant 0.000000e+00 : f32
    %16 = vector.broadcast %cst_13 : f32 to vector<16x128xf32>
    %17 = arith.maximumf %15, %16 : vector<16x128xf32>
    %c1 = arith.constant 1 : index
    %c0_14 = arith.constant 0 : index
    %c0_15 = arith.constant 0 : index
    %18 = vector.load %arg4[%c1, %c0_14, %c0_15] : memref<2x128x128xbf16, #tpu.memory_space<vmem>>, vector<1x128x128xbf16>
    %19 = vector.shape_cast %18 : vector<1x128x128xbf16> to vector<128x128xbf16>
    %c1_16 = arith.constant 1 : index
    %c0_17 = arith.constant 0 : index
    %c0_18 = arith.constant 0 : index
    %20 = vector.load %arg5[%c1_16, %c0_17, %c0_18] : memref<2x1x128xf32, #tpu.memory_space<vmem>>, vector<1x1x128xf32>
    %21 = vector.shape_cast %20 : vector<1x1x128xf32> to vector<1x128xf32>
    %22 = arith.truncf %17 : vector<16x128xf32> to vector<16x128xbf16>
    %cst_19 = arith.constant dense<0.000000e+00> : vector<16x128xf32>
    %23 = tpu.matmul %22, %19, %cst_19 {dimension_numbers = #tpu.dot_dimension_numbers<[1], [0], [0], [1], [0, 0, 1, 1], [], []>} : vector<16x128xbf16>, vector<128x128xbf16>, vector<16x128xf32> -> vector<16x128xf32>
    %24 = vector.broadcast %21 : vector<1x128xf32> to vector<16x128xf32>
    %25 = arith.addf %23, %24 : vector<16x128xf32>
    %cst_20 = arith.constant 0.000000e+00 : f32
    %26 = vector.broadcast %cst_20 : f32 to vector<16x128xf32>
    %27 = arith.maximumf %25, %26 : vector<16x128xf32>
    %28 = arith.truncf %27 : vector<16x128xf32> to vector<16x128xbf16>
    %c0_21 = arith.constant 0 : index
    %c0_22 = arith.constant 0 : index
    %29 = vector.load %arg6[%c0_21, %c0_22] : memref<128x128xbf16, #tpu.memory_space<vmem>>, vector<128x128xbf16>
    %cst_23 = arith.constant dense<0.000000e+00> : vector<16x128xf32>
    %30 = tpu.matmul %28, %29, %cst_23 {dimension_numbers = #tpu.dot_dimension_numbers<[1], [0], [0], [1], [0, 0, 1, 1], [], []>} : vector<16x128xbf16>, vector<128x128xbf16>, vector<16x128xf32> -> vector<16x128xf32>
    %c0_24 = arith.constant 0 : index
    %c0_25 = arith.constant 0 : index
    %31 = vector.load %arg7[%c0_24, %c0_25] : memref<1x128xf32, #tpu.memory_space<vmem>>, vector<1x128xf32>
    %32 = vector.broadcast %31 : vector<1x128xf32> to vector<16x128xf32>
    %33 = arith.addf %30, %32 : vector<16x128xf32>
    %34 = arith.truncf %33 : vector<16x128xf32> to vector<16x128xbf16>
    %c0_26 = arith.constant 0 : index
    %c0_27 = arith.constant 0 : index
    %35 = vector.load %arg8[%c0_26, %c0_27] : memref<16x128xbf16, #tpu.memory_space<vmem>>, vector<16x128xbf16>
    tpu.vector_store %arg8[%c0_26, %c0_27], %34 {strides = array<i32>} : memref<16x128xbf16, #tpu.memory_space<vmem>>, vector<16x128xbf16>,
    return
  }
  func.func @transform_0(%arg0: i32) -> (i32, i32) {
    %c0_i32 = arith.constant 0 : i32
    %c0_i32_0 = arith.constant 0 : i32
    return %arg0, %c0_i32 : i32, i32
  }
  func.func @transform_1(%arg0: i32) -> (i32, i32) {
    %c0_i32 = arith.constant 0 : i32
    %c0_i32_0 = arith.constant 0 : i32
    %c0_i32_1 = arith.constant 0 : i32
    return %c0_i32, %c0_i32_0 : i32, i32
  }
  func.func @transform_2(%arg0: i32) -> (i32, i32) {
    %c0_i32 = arith.constant 0 : i32
    %c0_i32_0 = arith.constant 0 : i32
    %c0_i32_1 = arith.constant 0 : i32
    return %c0_i32, %c0_i32_0 : i32, i32
  }
  func.func @transform_3(%arg0: i32) -> (i32, i32, i32) {
    %c0_i32 = arith.constant 0 : i32
    %c0_i32_0 = arith.constant 0 : i32
    %c0_i32_1 = arith.constant 0 : i32
    %c0_i32_2 = arith.constant 0 : i32
    return %c0_i32, %c0_i32_0, %c0_i32_1 : i32, i32, i32
  }
  func.func @transform_4(%arg0: i32) -> (i32, i32, i32) {
    %c0_i32 = arith.constant 0 : i32
    %c0_i32_0 = arith.constant 0 : i32
    %c0_i32_1 = arith.constant 0 : i32
    %c0_i32_2 = arith.constant 0 : i32
    return %c0_i32, %c0_i32_0, %c0_i32_1 : i32, i32, i32
  }
  func.func @transform_5(%arg0: i32) -> (i32, i32) {
    %c0_i32 = arith.constant 0 : i32
    %c0_i32_0 = arith.constant 0 : i32
    %c0_i32_1 = arith.constant 0 : i32
    return %c0_i32, %c0_i32_0 : i32, i32
  }
  func.func @transform_6(%arg0: i32) -> (i32, i32) {
    %c0_i32 = arith.constant 0 : i32
    %c0_i32_0 = arith.constant 0 : i32
    %c0_i32_1 = arith.constant 0 : i32
    return %c0_i32, %c0_i32_0 : i32, i32
  }
  func.func @transform_7(%arg0: i32) -> (i32, i32) {
    %c0_i32 = arith.constant 0 : i32
    %c0_i32_0 = arith.constant 0 : i32
    return %arg0, %c0_i32 : i32, i32
  }
}

module attributes {stable_mosaic.version = 11 : i64} {
  func.func @_mlp_kernel(%arg0: i32, %arg1: memref<16x32xbf16, #tpu.memory_space<vmem>>, %arg2: memref<32x128xbf16, #tpu.memory_space<vmem>>, %arg3: memref<1x128xf32, #tpu.memory_space<vmem>>, %arg4: memref<2x128x128xbf16, #tpu.memory_space<vmem>>, %arg5: memref<2x1x128xf32, #tpu.memory_space<vmem>>, %arg6: memref<128x128xbf16, #tpu.memory_space<vmem>>, %arg7: memref<1x128xf32, #tpu.memory_space<vmem>>, %arg8: memref<16x128xbf16, #tpu.memory_space<vmem>>) attributes {dimension_semantics = [#tpu.dimension_semantics<parallel>], iteration_bounds = array<i64: 1>, scalar_prefetch = 0 : i64, scratch_operands = 0 : i64, tpu.core_type = #tpu.core_type<tc>, window_params = [{transform_indices = @transform_0, window_bounds = array<i64: 16, 32>}, {pipeline_mode = #tpu.pipeline_mode<synchronous>, transform_indices = @transform_1, window_bounds = array<i64: 32, 128>}, {pipeline_mode = #tpu.pipeline_mode<synchronous>, transform_indices = @transform_2, window_bounds = array<i64: 1, 128>}, {pipeline_mode = #tpu.pipeline_mode<synchronous>, transform_indices = @transform_3, window_bounds = array<i64: 2, 128, 128>}, {pipeline_mode = #tpu.pipeline_mode<synchronous>, transform_indices = @transform_4, window_bounds = array<i64: 2, 1, 128>}, {pipeline_mode = #tpu.pipeline_mode<synchronous>, transform_indices = @transform_5, window_bounds = array<i64: 128, 128>}, {pipeline_mode = #tpu.pipeline_mode<synchronous>, transform_indices = @transform_6, window_bounds = array<i64: 1, 128>}, {transform_indices = @transform_7, window_bounds = array<i64: 16, 128>}]} {
    %c0 = arith.constant 0 : index
    %c0_0 = arith.constant 0 : index
    %0 = vector.load %arg1[%c0, %c0_0] : memref<16x32xbf16, #tpu.memory_space<vmem>>, vector<16x32xbf16>
    %c0_1 = arith.constant 0 : index
    %c0_2 = arith.constant 0 : index
    %1 = vector.load %arg2[%c0_1, %c0_2] : memref<32x128xbf16, #tpu.memory_space<vmem>>, vector<32x128xbf16>
    %c0_3 = arith.constant 0 : index
    %c0_4 = arith.constant 0 : index
    %2 = vector.load %arg3[%c0_3, %c0_4] : memref<1x128xf32, #tpu.memory_space<vmem>>, vector<1x128xf32>
    %cst = arith.constant dense<0.000000e+00> : vector<16x128xf32>
    %3 = tpu.matmul %0, %1, %cst {dimension_numbers = #tpu.dot_dimension_numbers<[1], [0], [0], [1], [0, 0, 1, 1], [], []>} : vector<16x32xbf16>, vector<32x128xbf16>, vector<16x128xf32> -> vector<16x128xf32>
    %4 = vector.broadcast %2 : vector<1x128xf32> to vector<16x128xf32>
    %5 = arith.addf %3, %4 : vector<16x128xf32>
    %cst_5 = arith.constant 0.000000e+00 : f32
    %6 = vector.broadcast %cst_5 : f32 to vector<16x128xf32>
    %7 = arith.maximumf %5, %6 : vector<16x128xf32>
    %c0_6 = arith.constant 0 : index
    %c0_7 = arith.constant 0 : index
    %c0_8 = arith.constant 0 : index
    %8 = vector.load %arg4[%c0_6, %c0_7, %c0_8] : memref<2x128x128xbf16, #tpu.memory_space<vmem>>, vector<1x128x128xbf16>
    %9 = vector.shape_cast %8 : vector<1x128x128xbf16> to vector<128x128xbf16>
    %c0_9 = arith.constant 0 : index
    %c0_10 = arith.constant 0 : index
    %c0_11 = arith.constant 0 : index
    %10 = vector.load %arg5[%c0_9, %c0_10, %c0_11] : memref<2x1x128xf32, #tpu.memory_space<vmem>>, vector<1x1x128xf32>
    %11 = vector.shape_cast %10 : vector<1x1x128xf32> to vector<1x128xf32>
    %12 = arith.truncf %7 : vector<16x128xf32> to vector<16x128xbf16>
    %cst_12 = arith.constant dense<0.000000e+00> : vector<16x128xf32>
    %13 = tpu.matmul %12, %9, %cst_12 {dimension_numbers = #tpu.dot_dimension_numbers<[1], [0], [0], [1], [0, 0, 1, 1], [], []>} : vector<16x128xbf16>, vector<128x128xbf16>, vector<16x128xf32> -> vector<16x128xf32>
    %14 = vector.broadcast %11 : vector<1x128xf32> to vector<16x128xf32>
    %15 = arith.addf %13, %14 : vector<16x128xf32>
    %cst_13 = arith.constant 0.000000e+00 : f32
    %16 = vector.broadcast %cst_13 : f32 to vector<16x128xf32>
    %17 = arith.maximumf %15, %16 : vector<16x128xf32>
    %c1 = arith.constant 1 : index
    %c0_14 = arith.constant 0 : index
    %c0_15 = arith.constant 0 : index
    %18 = vector.load %arg4[%c1, %c0_14, %c0_15] : memref<2x128x128xbf16, #tpu.memory_space<vmem>>, vector<1x128x128xbf16>
    %19 = vector.shape_cast %18 : vector<1x128x128xbf16> to vector<128x128xbf16>
    %c1_16 = arith.constant 1 : index
    %c0_17 = arith.constant 0 : index
    %c0_18 = arith.constant 0 : index
    %20 = vector.load %arg5[%c1_16, %c0_17, %c0_18] : memref<2x1x128xf32, #tpu.memory_space<vmem>>, vector<1x1x128xf32>
    %21 = vector.shape_cast %20 : vector<1x1x128xf32> to vector<1x128xf32>
    %22 = arith.truncf %17 : vector<16x128xf32> to vector<16x128xbf16>
    %cst_19 = arith.constant dense<0.000000e+00> : vector<16x128xf32>
    %23 = tpu.matmul %22, %19, %cst_19 {dimension_numbers = #tpu.dot_dimension_numbers<[1], [0], [0], [1], [0, 0, 1, 1], [], []>} : vector<16x128xbf16>, vector<128x128xbf16>, vector<16x128xf32> -> vector<16x128xf32>
    %24 = vector.broadcast %21 : vector<1x128xf32> to vector<16x128xf32>
    %25 = arith.addf %23, %24 : vector<16x128xf32>
    %cst_20 = arith.constant 0.000000e+00 : f32
    %26 = vector.broadcast %cst_20 : f32 to vector<16x128xf32>
    %27 = arith.maximumf %25, %26 : vector<16x128xf32>
    %28 = arith.truncf %27 : vector<16x128xf32> to vector<16x128xbf16>
    %c0_21 = arith.constant 0 : index
    %c0_22 = arith.constant 0 : index
    %29 = vector.load %arg6[%c0_21, %c0_22] : memref<128x128xbf16, #tpu.memory_space<vmem>>, vector<128x128xbf16>
    %cst_23 = arith.constant dense<0.000000e+00> : vector<16x128xf32>
    %30 = tpu.matmul %28, %29, %cst_23 {dimension_numbers = #tpu.dot_dimension_numbers<[1], [0], [0], [1], [0, 0, 1, 1], [], []>} : vector<16x128xbf16>, vector<128x128xbf16>, vector<16x128xf32> -> vector<16x128xf32>
    %c0_24 = arith.constant 0 : index
    %c0_25 = arith.constant 0 : index
    %31 = vector.load %arg7[%c0_24, %c0_25] : memref<1x128xf32, #tpu.memory_space<vmem>>, vector<1x128xf32>
    %32 = vector.broadcast %31 : vector<1x128xf32> to vector<16x128xf32>
    %33 = arith.addf %30, %32 : vector<16x128xf32>
    %34 = arith.truncf %33 : vector<16x128xf32> to vector<16x128xbf16>
    %c0_26 = arith.constant 0 : index
    %c0_27 = arith.constant 0 : index
    %35 = vector.load %arg8[%c0_26, %c0_27] : memref<16x128xbf16, #tpu.memory_space<vmem>>, vector<16x128xbf16>
    tpu.vector_store %arg8[%c0_26, %c0_27], %34 {strides = array<i32>} : memref<16x128xbf16, #tpu.memory_space<vmem>>, vector<16x128xbf16>,
    return
  }
  func.func @transform_0(%arg0: i32) -> (i32, i32) {
    %c0_i32 = arith.constant 0 : i32
    %c0_i32_0 = arith.constant 0 : i32
    return %arg0, %c0_i32 : i32, i32
  }
  func.func @transform_1(%arg0: i32) -> (i32, i32) {
    %c0_i32 = arith.constant 0 : i32
    %c0_i32_0 = arith.constant 0 : i32
    %c0_i32_1 = arith.constant 0 : i32
    return %c0_i32, %c0_i32_0 : i32, i32
  }
  func.func @transform_2(%arg0: i32) -> (i32, i32) {
    %c0_i32 = arith.constant 0 : i32
    %c0_i32_0 = arith.constant 0 : i32
    %c0_i32_1 = arith.constant 0 : i32
    return %c0_i32, %c0_i32_0 : i32, i32
  }
  func.func @transform_3(%arg0: i32) -> (i32, i32, i32) {
    %c0_i32 = arith.constant 0 : i32
    %c0_i32_0 = arith.constant 0 : i32
    %c0_i32_1 = arith.constant 0 : i32
    %c0_i32_2 = arith.constant 0 : i32
    return %c0_i32, %c0_i32_0, %c0_i32_1 : i32, i32, i32
  }
  func.func @transform_4(%arg0: i32) -> (i32, i32, i32) {
    %c0_i32 = arith.constant 0 : i32
    %c0_i32_0 = arith.constant 0 : i32
    %c0_i32_1 = arith.constant 0 : i32
    %c0_i32_2 = arith.constant 0 : i32
    return %c0_i32, %c0_i32_0, %c0_i32_1 : i32, i32, i32
  }
  func.func @transform_5(%arg0: i32) -> (i32, i32) {
    %c0_i32 = arith.constant 0 : i32
    %c0_i32_0 = arith.constant 0 : i32
    %c0_i32_1 = arith.constant 0 : i32
    return %c0_i32, %c0_i32_0 : i32, i32
  }
  func.func @transform_6(%arg0: i32) -> (i32, i32) {
    %c0_i32 = arith.constant 0 : i32
    %c0_i32_0 = arith.constant 0 : i32
    %c0_i32_1 = arith.constant 0 : i32
    return %c0_i32, %c0_i32_0 : i32, i32
  }
  func.func @transform_7(%arg0: i32) -> (i32, i32) {
    %c0_i32 = arith.constant 0 : i32
    %c0_i32_0 = arith.constant 0 : i32
    return %arg0, %c0_i32 : i32, i32
  }
}

</mosaic_0001>

<llo_original>
// kernel: tpu_custom_call.1
$region0: #{tpu_custom_call.1}
  #allocation0 [shape = 'u32[]', space=smem, size = 0x4, offset = 0x4, fixed_abs, tag = 'smem constant byte address 0x4 - core index']
  #allocation1 [shape = 'u32[144,128]{1,0:T(1,128)}', space=vmem, size = 0x12000, scoped, tag = 'internal scratch']
  %s0 = inlined_call_operand.hbm [shape: bf16[16,32], index: 0, kind: input, shape index: {}]
  %s1 = inlined_call_operand.hbm [shape: bf16[32,128], index: 1, kind: input, shape index: {}]
  %s2 = inlined_call_operand.vmem [shape: f32[1,128], index: 2, kind: input, shape index: {}]
  %s3 = inlined_call_operand.hbm [shape: bf16[2,128,128], index: 3, kind: input, shape index: {}]
  %s4 = inlined_call_operand.vmem [shape: f32[2,1,128], index: 4, kind: input, shape index: {}]
  %s5 = inlined_call_operand.hbm [shape: bf16[128,128], index: 5, kind: input, shape index: {}]
  %s6 = inlined_call_operand.vmem [shape: f32[1,128], index: 6, kind: input, shape index: {}]
  %s7 = inlined_call_operand.hbm [shape: bf16[16,128], index: 7, kind: output, shape index: {}]
  %s8 = sld [smem:[#allocation0]]
  $region54: #{tpu_custom_call.1} parent=0
    _
  %s10 = ssub.s32 1, %s8
  %s11 = scalar_select 0, %s10, %s8
  $region1: #{tpu_custom_call.1} parent=0
    #allocation2 [shape = 'u8[4096]{0}', space=vmem, size = 0x1000, scoped, tag = 'input window, operand 0, single buffered']
    #allocation3 [shape = 's32[1]{0}', space=sflag, size = 0x4, scoped, tag = 'scoped memory for tpu_custom_call.1']
    #allocation4 [shape = 's32[1]{0}', space=sflag, size = 0x4, scoped, tag = 'scoped memory for tpu_custom_call.1']
    #allocation5 [shape = 'u8[8192]{0}', space=vmem, size = 0x2000, scoped, tag = 'input window, operand 1, single buffered']
    #allocation6 [shape = 's32[1]{0}', space=sflag, size = 0x4, scoped, tag = 'scoped memory for tpu_custom_call.1']
    #allocation7 [shape = 'u8[65536]{0}', space=vmem, size = 0x10000, scoped, tag = 'input window, operand 3, single buffered']
    #allocation8 [shape = 'u8[32768]{0}', space=vmem, size = 0x8000, scoped, tag = 'input window, operand 5, single buffered']
    #allocation9 [shape = 's32[1]{0}', space=sflag, size = 0x4, scoped, tag = 'scoped memory for tpu_custom_call.1']
    #allocation10 [shape = 'u8[4096]{0}', space=vmem, size = 0x1000, scoped, tag = 'output window, operand 0, single buffered']
    %12 = vsyncpa [#allocation3], 0
    %13 = vsyncpa [#allocation6], 0
    %14 = vsyncpa [#allocation9], 0
    %15 = vsyncpa [#allocation4], 0
    // Predicated region
    $region2: #{tpu_custom_call.1} parent=1 // pred_check
      _
    $region3: #{tpu_custom_call.1} parent=1 // pred_check_branch
      %17 = sbr.rel (0) target = $region5
    $region4: #{tpu_custom_call.1} parent=1 // pred_region
      %s19 = ssub.s32 128, 128
      %20 = vsyncadd [#allocation3], %s19
      %s21 = sshll.u32 [#allocation2], 4
      %s22 = int_to_ptr.vmem [resolvable:$true] %s21
      %27 = dma.hbm_to_vmem [thread:$0]  %s0, 128, %s22, [#allocation3], 64, 64, 4
    $region5: #{tpu_custom_call.1} parent=1 // pred_fallthru
      _
    // Predicated region
    $region6: #{tpu_custom_call.1} parent=1 // pred_check
      _
    $region7: #{tpu_custom_call.1} parent=1 // pred_check_branch
      %29 = sbr.rel (0) target = $region9
    $region8: #{tpu_custom_call.1} parent=1 // pred_region
      %s31 = ssub.s32 256, 256
      %32 = vsyncadd [#allocation6], %s31
      %s33 = sshll.u32 [#allocation5], 4
      %s34 = int_to_ptr.vmem [resolvable:$true] %s33
      %39 = dma.hbm_to_vmem [thread:$0]  %s1, 256, %s34, [#allocation6], 64, 64, 4
    $region9: #{tpu_custom_call.1} parent=1 // pred_fallthru
      _
    // Predicated region
    $region10: #{tpu_custom_call.1} parent=1 // pred_check
      _
    $region11: #{tpu_custom_call.1} parent=1 // pred_check_branch
      %41 = sbr.rel (0) target = $region13
    $region12: #{tpu_custom_call.1} parent=1 // pred_region
      _
    $region13: #{tpu_custom_call.1} parent=1 // pred_fallthru
      _
    // Predicated region
    $region14: #{tpu_custom_call.1} parent=1 // pred_check
      _
    $region15: #{tpu_custom_call.1} parent=1 // pred_check_branch
      %43 = sbr.rel (0) target = $region17
    $region16: #{tpu_custom_call.1} parent=1 // pred_region
      %s45 = ssub.s32 2048, 2048
      %46 = vsyncadd [#allocation6], %s45
      %s47 = sshll.u32 [#allocation7], 4
      %s48 = int_to_ptr.vmem [resolvable:$true] %s47
      %53 = dma.hbm_to_vmem [thread:$0]  %s3, 2048, %s48, [#allocation6], 64, 64, 4
    $region17: #{tpu_custom_call.1} parent=1 // pred_fallthru
      _
    // Predicated region
    $region18: #{tpu_custom_call.1} parent=1 // pred_check
      _
    $region19: #{tpu_custom_call.1} parent=1 // pred_check_branch
      %55 = sbr.rel (0) target = $region21
    $region20: #{tpu_custom_call.1} parent=1 // pred_region
      _
    $region21: #{tpu_custom_call.1} parent=1 // pred_fallthru
      _
    // Predicated region
    $region22: #{tpu_custom_call.1} parent=1 // pred_check
      _
    $region23: #{tpu_custom_call.1} parent=1 // pred_check_branch
      %57 = sbr.rel (0) target = $region25
    $region24: #{tpu_custom_call.1} parent=1 // pred_region
      %s59 = ssub.s32 1024, 1024
      %60 = vsyncadd [#allocation9], %s59
      %s61 = sshll.u32 [#allocation8], 4
      %s62 = int_to_ptr.vmem [resolvable:$true] %s61
      %67 = dma.hbm_to_vmem [thread:$0]  %s5, 1024, %s62, [#allocation9], 64, 64, 4
    $region25: #{tpu_custom_call.1} parent=1 // pred_fallthru
      _
    // Predicated region
    $region26: #{tpu_custom_call.1} parent=1 // pred_check
      _
    $region27: #{tpu_custom_call.1} parent=1 // pred_check_branch
      %69 = sbr.rel (0) target = $region29
    $region28: #{tpu_custom_call.1} parent=1 // pred_region
      _
    $region29: #{tpu_custom_call.1} parent=1 // pred_fallthru
      _
    // Predicated region
    $region30: #{tpu_custom_call.1} parent=1 // pred_check
      _
    $region31: #{tpu_custom_call.1} parent=1 // pred_check_branch
      %71 = sbr.rel (0) target = $region33
    $region32: #{tpu_custom_call.1} parent=1 // pred_region
      %72 = dma.done [#allocation3], 128
    $region33: #{tpu_custom_call.1} parent=1 // pred_fallthru
      _
    // Predicated region
    $region34: #{tpu_custom_call.1} parent=1 // pred_check
      _
    $region35: #{tpu_custom_call.1} parent=1 // pred_check_branch
      %74 = sbr.rel (0) target = $region37
    $region36: #{tpu_custom_call.1} parent=1 // pred_region
      %75 = dma.done [#allocation6], 256
    $region37: #{tpu_custom_call.1} parent=1 // pred_fallthru
      _
    // Predicated region
    $region38: #{tpu_custom_call.1} parent=1 // pred_check
      _
    $region39: #{tpu_custom_call.1} parent=1 // pred_check_branch
      %77 = sbr.rel (0) target = $region41
    $region40: #{tpu_custom_call.1} parent=1 // pred_region
      %78 = dma.done [#allocation6], 2048
    $region41: #{tpu_custom_call.1} parent=1 // pred_fallthru
      _
    // Predicated region
    $region42: #{tpu_custom_call.1} parent=1 // pred_check
      _
    $region43: #{tpu_custom_call.1} parent=1 // pred_check_branch
      %80 = sbr.rel (0) target = $region45
    $region44: #{tpu_custom_call.1} parent=1 // pred_region
      %81 = dma.done [#allocation9], 1024
    $region45: #{tpu_custom_call.1} parent=1 // pred_fallthru
      _
    %v83 = vld [vmem:[#allocation2] sm:$0xf]
    %v84 = vld [vmem:[#allocation2 + $0x4] sm:$0xf]
    %v85 = vld [vmem:[#allocation5] sm:$0xf]
    %v86 = vld [vmem:[#allocation5 + $0x4] sm:$0xf]
    %v87 = vld [vmem:[#allocation5 + $0x8] sm:$0xf]
    %v88 = vld [vmem:[#allocation5 + $0xc] sm:$0xf]
    %v89 = vld [vmem:[%s2] sm:$0x1]
    %v91 = vlaneseq
    %v92 = vshrl.u32 %v91, 7
    %v93 = vsub.s32 0, %v92
    %v94 = vrot.slane %v89, %v93
    %v98 = vunpack.c.l.b16 %v83
    %v99 = vunpack.c.l.b16 %v84
    %v100 = vpack.c.b16 %v99, %v98
    %v105 = vunpack.c.l.b16 %v85
    %v106 = vunpack.c.l.b16 %v86
    %v107 = vunpack.c.l.b16 %v87
    %v108 = vunpack.c.l.b16 %v88
    %v109 = vpack.c.b16 %v106, %v105
    %v110 = vpack.c.b16 %v108, %v107
    %vm113 = vcmask 261120
    %v115 = vsel %vm113, %v100, 0
    %117 = vmatprep.subr.bf16.mxu0 0
    %118 = vmatpush1.bf16.msra.mxu0 %v109
    %119 = vmatprep.subr.bf16.mxu0 0
    %120 = vmatpush1.bf16.msra.mxu0 %v110
    %121 = vmatprep.subr.bf16.mxu0 0
    %122 = vmatpush1.bf16.msra.mxu0 0
    %123 = vmatprep.subr.bf16.mxu0 0
    %124 = vmatpush1.bf16.msra.mxu0 0
    %125 = vmatprep.subr.bf16.mxu0 0
    %126 = vmatpush1.bf16.msra.mxu0 0
    %127 = vmatprep.subr.bf16.mxu0 0
    %128 = vmatpush1.bf16.msra.mxu0 0
    %129 = vmatprep.subr.bf16.mxu0 0
    %130 = vmatpush1.bf16.msra.mxu0 0
    %131 = vmatprep.subr.bf16.mxu0 0
    %132 = vmatpush1.bf16.msra.mxu0 0
    %133 = vmatprep.subr.bf16.mxu0 0
    %134 = vmatpush1.bf16.msra.mxu0 0
    %135 = vmatprep.subr.bf16.mxu0 0
    %136 = vmatpush1.bf16.msra.mxu0 0
    %137 = vmatprep.subr.bf16.mxu0 0
    %138 = vmatpush1.bf16.msra.mxu0 0
    %139 = vmatprep.subr.bf16.mxu0 0
    %140 = vmatpush1.bf16.msra.mxu0 0
    %141 = vmatprep.subr.bf16.mxu0 0
    %142 = vmatpush1.bf16.msra.mxu0 0
    %143 = vmatprep.subr.bf16.mxu0 0
    %144 = vmatpush1.bf16.msra.mxu0 0
    %145 = vmatprep.subr.bf16.mxu0 0
    %146 = vmatpush1.bf16.msra.mxu0 0
    %147 = vmatprep.subr.bf16.mxu0 0
    %148 = vmatpush1.bf16.msra.mxu0 0
    %149 = vmatprep.mubr.bf16.mxu0 0
    %150 = vmatmul.mubr.bf16.gmra.mrb[0].mxu0 %v115
    %v151 = vpop.f32.mrb[0].mxu0
    %v152 = vadd.f32 %v94, %v151
    %v153 = vpop.f32.mrb[0].mxu0
    %v154 = vpop.f32.mrb[0].mxu0
    %v155 = vadd.f32 %v94, %v154
    %v156 = vpop.f32.mrb[0].mxu0
    %157 = vdwg.mxu0
    %v158 = vmax.f32 %v152, 0.0
    %v159 = vmax.f32 %v155, 0.0
    %v160 = vld [vmem:[#allocation7] sm:$0xf]
    %v161 = vld [vmem:[#allocation7 + $0x4] sm:$0xf]
    %v162 = vld [vmem:[#allocation7 + $0x8] sm:$0xf]
    %v163 = vld [vmem:[#allocation7 + $0xc] sm:$0xf]
    %v164 = vld [vmem:[#allocation7 + $0x10] sm:$0xf]
    %v165 = vld [vmem:[#allocation7 + $0x14] sm:$0xf]
    %v166 = vld [vmem:[#allocation7 + $0x18] sm:$0xf]
    %v167 = vld [vmem:[#allocation7 + $0x1c] sm:$0xf]
    %v168 = vld [vmem:[#allocation7 + $0x20] sm:$0xf]
    %v169 = vld [vmem:[#allocation7 + $0x24] sm:$0xf]
    %v170 = vld [vmem:[#allocation7 + $0x28] sm:$0xf]
    %v171 = vld [vmem:[#allocation7 + $0x2c] sm:$0xf]
    %v172 = vld [vmem:[#allocation7 + $0x30] sm:$0xf]
    %v173 = vld [vmem:[#allocation7 + $0x34] sm:$0xf]
    %v174 = vld [vmem:[#allocation7 + $0x38] sm:$0xf]
    %v175 = vld [vmem:[#allocation7 + $0x3c] sm:$0xf]
    %v176 = vld [vmem:[%s4] sm:$0x1]
    %v177 = vpack.c.bf16 %v159, %v158
    %v179 = vlaneseq
    %v180 = vshrl.u32 %v179, 7
    %v181 = vsub.s32 0, %v180
    %v182 = vrot.slane %v176, %v181
    %v200 = vunpack.c.l.b16 %v160
    %v201 = vunpack.c.l.b16 %v161
    %v202 = vunpack.c.l.b16 %v162
    %v203 = vunpack.c.l.b16 %v163
    %v204 = vunpack.c.l.b16 %v164
    %v205 = vunpack.c.l.b16 %v165
    %v206 = vunpack.c.l.b16 %v166
    %v207 = vunpack.c.l.b16 %v167
    %v208 = vunpack.c.l.b16 %v168
    %v209 = vunpack.c.l.b16 %v169
    %v210 = vunpack.c.l.b16 %v170
    %v211 = vunpack.c.l.b16 %v171
    %v212 = vunpack.c.l.b16 %v172
    %v213 = vunpack.c.l.b16 %v173
    %v214 = vunpack.c.l.b16 %v174
    %v215 = vunpack.c.l.b16 %v175
    %v216 = vpack.c.b16 %v201, %v200
    %v217 = vpack.c.b16 %v203, %v202
    %v218 = vpack.c.b16 %v205, %v204
    %v219 = vpack.c.b16 %v207, %v206
    %v220 = vpack.c.b16 %v209, %v208
    %v221 = vpack.c.b16 %v211, %v210
    %v222 = vpack.c.b16 %v213, %v212
    %v223 = vpack.c.b16 %v215, %v214
    %232 = vmatprep.subr.bf16.mxu0 0
    %233 = vmatpush1.bf16.msra.mxu0 %v216
    %234 = vmatprep.subr.bf16.mxu0 0
    %235 = vmatpush1.bf16.msra.mxu0 %v217
    %236 = vmatprep.subr.bf16.mxu0 0
    %237 = vmatpush1.bf16.msra.mxu0 %v218
    %238 = vmatprep.subr.bf16.mxu0 0
    %239 = vmatpush1.bf16.msra.mxu0 %v219
    %240 = vmatprep.subr.bf16.mxu0 0
    %241 = vmatpush1.bf16.msra.mxu0 %v220
    %242 = vmatprep.subr.bf16.mxu0 0
    %243 = vmatpush1.bf16.msra.mxu0 %v221
    %244 = vmatprep.subr.bf16.mxu0 0
    %245 = vmatpush1.bf16.msra.mxu0 %v222
    %246 = vmatprep.subr.bf16.mxu0 0
    %247 = vmatpush1.bf16.msra.mxu0 %v223
    %248 = vmatprep.subr.bf16.mxu0 0
    %249 = vmatpush1.bf16.msra.mxu0 0
    %250 = vmatprep.subr.bf16.mxu0 0
    %251 = vmatpush1.bf16.msra.mxu0 0
    %252 = vmatprep.subr.bf16.mxu0 0
    %253 = vmatpush1.bf16.msra.mxu0 0
    %254 = vmatprep.subr.bf16.mxu0 0
    %255 = vmatpush1.bf16.msra.mxu0 0
    %256 = vmatprep.subr.bf16.mxu0 0
    %257 = vmatpush1.bf16.msra.mxu0 0
    %258 = vmatprep.subr.bf16.mxu0 0
    %259 = vmatpush1.bf16.msra.mxu0 0
    %260 = vmatprep.subr.bf16.mxu0 0
    %261 = vmatpush1.bf16.msra.mxu0 0
    %262 = vmatprep.subr.bf16.mxu0 0
    %263 = vmatpush1.bf16.msra.mxu0 0
    %264 = vmatprep.mubr.bf16.mxu0 0
    %265 = vmatmul.mubr.bf16.gmra.mrb[0].mxu0 %v177
    %v266 = vpop.f32.mrb[0].mxu0
    %v267 = vadd.f32 %v182, %v266
    %v268 = vpop.f32.mrb[0].mxu0
    %v269 = vpop.f32.mrb[0].mxu0
    %v270 = vadd.f32 %v182, %v269
    %v271 = vpop.f32.mrb[0].mxu0
    %272 = vdwg.mxu0
    %v273 = vmax.f32 %v267, 0.0
    %v274 = vmax.f32 %v270, 0.0
    %s275 = scalar_lea.vmem [#allocation7], 64
    %v276 = vld [vmem:[%s275] sm:$0xf]
    %v277 = vld [vmem:[%s275 + $0x4] sm:$0xf]
    %v278 = vld [vmem:[%s275 + $0x8] sm:$0xf]
    %v279 = vld [vmem:[%s275 + $0xc] sm:$0xf]
    %v280 = vld [vmem:[%s275 + $0x10] sm:$0xf]
    %v281 = vld [vmem:[%s275 + $0x14] sm:$0xf]
    %v282 = vld [vmem:[%s275 + $0x18] sm:$0xf]
    %v283 = vld [vmem:[%s275 + $0x1c] sm:$0xf]
    %v284 = vld [vmem:[%s275 + $0x20] sm:$0xf]
    %v285 = vld [vmem:[%s275 + $0x24] sm:$0xf]
    %v286 = vld [vmem:[%s275 + $0x28] sm:$0xf]
    %v287 = vld [vmem:[%s275 + $0x2c] sm:$0xf]
    %v288 = vld [vmem:[%s275 + $0x30] sm:$0xf]
    %v289 = vld [vmem:[%s275 + $0x34] sm:$0xf]
    %v290 = vld [vmem:[%s275 + $0x38] sm:$0xf]
    %v291 = vld [vmem:[%s275 + $0x3c] sm:$0xf]
    %s292 = scalar_lea.vmem %s4, 1
    %v293 = vld [vmem:[%s292] sm:$0x1]
    %v294 = vpack.c.bf16 %v274, %v273
    %v296 = vlaneseq
    %v297 = vshrl.u32 %v296, 7
    %v298 = vsub.s32 0, %v297
    %v299 = vrot.slane %v293, %v298
    %v317 = vunpack.c.l.b16 %v276
    %v318 = vunpack.c.l.b16 %v277
    %v319 = vunpack.c.l.b16 %v278
    %v320 = vunpack.c.l.b16 %v279
    %v321 = vunpack.c.l.b16 %v280
    %v322 = vunpack.c.l.b16 %v281
    %v323 = vunpack.c.l.b16 %v282
    %v324 = vunpack.c.l.b16 %v283
    %v325 = vunpack.c.l.b16 %v284
    %v326 = vunpack.c.l.b16 %v285
    %v327 = vunpack.c.l.b16 %v286
    %v328 = vunpack.c.l.b16 %v287
    %v329 = vunpack.c.l.b16 %v288
    %v330 = vunpack.c.l.b16 %v289
    %v331 = vunpack.c.l.b16 %v290
    %v332 = vunpack.c.l.b16 %v291
    %v333 = vpack.c.b16 %v318, %v317
    %v334 = vpack.c.b16 %v320, %v319
    %v335 = vpack.c.b16 %v322, %v321
    %v336 = vpack.c.b16 %v324, %v323
    %v337 = vpack.c.b16 %v326, %v325
    %v338 = vpack.c.b16 %v328, %v327
    %v339 = vpack.c.b16 %v330, %v329
    %v340 = vpack.c.b16 %v332, %v331
    %349 = vmatprep.subr.bf16.mxu0 0
    %350 = vmatpush1.bf16.msra.mxu0 %v333
    %351 = vmatprep.subr.bf16.mxu0 0
    %352 = vmatpush1.bf16.msra.mxu0 %v334
    %353 = vmatprep.subr.bf16.mxu0 0
    %354 = vmatpush1.bf16.msra.mxu0 %v335
    %355 = vmatprep.subr.bf16.mxu0 0
    %356 = vmatpush1.bf16.msra.mxu0 %v336
    %357 = vmatprep.subr.bf16.mxu0 0
    %358 = vmatpush1.bf16.msra.mxu0 %v337
    %359 = vmatprep.subr.bf16.mxu0 0
    %360 = vmatpush1.bf16.msra.mxu0 %v338
    %361 = vmatprep.subr.bf16.mxu0 0
    %362 = vmatpush1.bf16.msra.mxu0 %v339
    %363 = vmatprep.subr.bf16.mxu0 0
    %364 = vmatpush1.bf16.msra.mxu0 %v340
    %365 = vmatprep.subr.bf16.mxu0 0
    %366 = vmatpush1.bf16.msra.mxu0 0
    %367 = vmatprep.subr.bf16.mxu0 0
    %368 = vmatpush1.bf16.msra.mxu0 0
    %369 = vmatprep.subr.bf16.mxu0 0
    %370 = vmatpush1.bf16.msra.mxu0 0
    %371 = vmatprep.subr.bf16.mxu0 0
    %372 = vmatpush1.bf16.msra.mxu0 0
    %373 = vmatprep.subr.bf16.mxu0 0
    %374 = vmatpush1.bf16.msra.mxu0 0
    %375 = vmatprep.subr.bf16.mxu0 0
    %376 = vmatpush1.bf16.msra.mxu0 0
    %377 = vmatprep.subr.bf16.mxu0 0
    %378 = vmatpush1.bf16.msra.mxu0 0
    %379 = vmatprep.subr.bf16.mxu0 0
    %380 = vmatpush1.bf16.msra.mxu0 0
    %381 = vmatprep.mubr.bf16.mxu0 0
    %382 = vmatmul.mubr.bf16.gmra.mrb[0].mxu0 %v294
    %v383 = vpop.f32.mrb[0].mxu0
    %v384 = vadd.f32 %v299, %v383
    %v385 = vpop.f32.mrb[0].mxu0
    %v386 = vpop.f32.mrb[0].mxu0
    %v387 = vadd.f32 %v299, %v386
    %v388 = vpop.f32.mrb[0].mxu0
    %389 = vdwg.mxu0
    %v390 = vmax.f32 %v384, 0.0
    %v391 = vmax.f32 %v387, 0.0
    %v392 = vpack.c.bf16 %v391, %v390
    %v393 = vld [vmem:[#allocation8] sm:$0xf]
    %v394 = vld [vmem:[#allocation8 + $0x4] sm:$0xf]
    %v395 = vld [vmem:[#allocation8 + $0x8] sm:$0xf]
    %v396 = vld [vmem:[#allocation8 + $0xc] sm:$0xf]
    %v397 = vld [vmem:[#allocation8 + $0x10] sm:$0xf]
    %v398 = vld [vmem:[#allocation8 + $0x14] sm:$0xf]
    %v399 = vld [vmem:[#allocation8 + $0x18] sm:$0xf]
    %v400 = vld [vmem:[#allocation8 + $0x1c] sm:$0xf]
    %v401 = vld [vmem:[#allocation8 + $0x20] sm:$0xf]
    %v402 = vld [vmem:[#allocation8 + $0x24] sm:$0xf]
    %v403 = vld [vmem:[#allocation8 + $0x28] sm:$0xf]
    %v404 = vld [vmem:[#allocation8 + $0x2c] sm:$0xf]
    %v405 = vld [vmem:[#allocation8 + $0x30] sm:$0xf]
    %v406 = vld [vmem:[#allocation8 + $0x34] sm:$0xf]
    %v407 = vld [vmem:[#allocation8 + $0x38] sm:$0xf]
    %v408 = vld [vmem:[#allocation8 + $0x3c] sm:$0xf]
    %v409 = vld [vmem:[%s6] sm:$0x1]
    %v411 = vlaneseq
    %v412 = vshrl.u32 %v411, 7
    %v413 = vsub.s32 0, %v412
    %v414 = vrot.slane %v409, %v413
    %v432 = vunpack.c.l.b16 %v393
    %v433 = vunpack.c.l.b16 %v394
    %v434 = vunpack.c.l.b16 %v395
    %v435 = vunpack.c.l.b16 %v396
    %v436 = vunpack.c.l.b16 %v397
    %v437 = vunpack.c.l.b16 %v398
    %v438 = vunpack.c.l.b16 %v399
    %v439 = vunpack.c.l.b16 %v400
    %v440 = vunpack.c.l.b16 %v401
    %v441 = vunpack.c.l.b16 %v402
    %v442 = vunpack.c.l.b16 %v403
    %v443 = vunpack.c.l.b16 %v404
    %v444 = vunpack.c.l.b16 %v405
    %v445 = vunpack.c.l.b16 %v406
    %v446 = vunpack.c.l.b16 %v407
    %v447 = vunpack.c.l.b16 %v408
    %v448 = vpack.c.b16 %v433, %v432
    %v449 = vpack.c.b16 %v435, %v434
    %v450 = vpack.c.b16 %v437, %v436
    %v451 = vpack.c.b16 %v439, %v438
    %v452 = vpack.c.b16 %v441, %v440
    %v453 = vpack.c.b16 %v443, %v442
    %v454 = vpack.c.b16 %v445, %v444
    %v455 = vpack.c.b16 %v447, %v446
    %464 = vmatprep.subr.bf16.mxu0 0
    %465 = vmatpush1.bf16.msra.mxu0 %v448
    %466 = vmatprep.subr.bf16.mxu0 0
    %467 = vmatpush1.bf16.msra.mxu0 %v449
    %468 = vmatprep.subr.bf16.mxu0 0
    %469 = vmatpush1.bf16.msra.mxu0 %v450
    %470 = vmatprep.subr.bf16.mxu0 0
    %471 = vmatpush1.bf16.msra.mxu0 %v451
    %472 = vmatprep.subr.bf16.mxu0 0
    %473 = vmatpush1.bf16.msra.mxu0 %v452
    %474 = vmatprep.subr.bf16.mxu0 0
    %475 = vmatpush1.bf16.msra.mxu0 %v453
    %476 = vmatprep.subr.bf16.mxu0 0
    %477 = vmatpush1.bf16.msra.mxu0 %v454
    %478 = vmatprep.subr.bf16.mxu0 0
    %479 = vmatpush1.bf16.msra.mxu0 %v455
    %480 = vmatprep.subr.bf16.mxu0 0
    %481 = vmatpush1.bf16.msra.mxu0 0
    %482 = vmatprep.subr.bf16.mxu0 0
    %483 = vmatpush1.bf16.msra.mxu0 0
    %484 = vmatprep.subr.bf16.mxu0 0
    %485 = vmatpush1.bf16.msra.mxu0 0
    %486 = vmatprep.subr.bf16.mxu0 0
    %487 = vmatpush1.bf16.msra.mxu0 0
    %488 = vmatprep.subr.bf16.mxu0 0
    %489 = vmatpush1.bf16.msra.mxu0 0
    %490 = vmatprep.subr.bf16.mxu0 0
    %491 = vmatpush1.bf16.msra.mxu0 0
    %492 = vmatprep.subr.bf16.mxu0 0
    %493 = vmatpush1.bf16.msra.mxu0 0
    %494 = vmatprep.subr.bf16.mxu0 0
    %495 = vmatpush1.bf16.msra.mxu0 0
    %496 = vmatprep.mubr.bf16.mxu0 0
    %497 = vmatmul.mubr.bf16.gmra.mrb[0].mxu0 %v392
    %v498 = vpop.f32.mrb[0].mxu0
    %v499 = vadd.f32 %v414, %v498
    %v500 = vpop.f32.mrb[0].mxu0
    %v501 = vpop.f32.mrb[0].mxu0
    %v502 = vadd.f32 %v414, %v501
    %v503 = vpop.f32.mrb[0].mxu0
    %504 = vdwg.mxu0
    %v505 = vpack.c.bf16 %v502, %v499
    %v507 = vunpack.c.l.b16 %v505
    %v508 = vunpack.c.h.b16 %v505
    %v509 = vpack.c.b16 %v507, %v507
    %v510 = vpack.c.b16 %v508, %v508
    %513 = vst [vmem:[#allocation10] sm:$0xf] %v509
    %514 = vst [vmem:[#allocation10 + $0x4] sm:$0xf] %v510
    // Predicated region
    $region46: #{tpu_custom_call.1} parent=1 // pred_check
      _
    $region47: #{tpu_custom_call.1} parent=1 // pred_check_branch
      %516 = sbr.rel (0) target = $region49
    $region48: #{tpu_custom_call.1} parent=1 // pred_region
      %s518 = ssub.s32 128, 128
      %519 = vsyncadd [#allocation4], %s518
      %s520 = sshll.u32 [#allocation10], 4
      %s521 = int_to_ptr.vmem [resolvable:$true] %s520
      %526 = dma.vmem_to_hbm [thread:$0]  %s521, 128, %s7, [#allocation4], 64, 64, 4
    $region49: #{tpu_custom_call.1} parent=1 // pred_fallthru
      _
    // Predicated region
    $region50: #{tpu_custom_call.1} parent=1 // pred_check
      _
    $region51: #{tpu_custom_call.1} parent=1 // pred_check_branch
      %528 = sbr.rel (0) target = $region53
    $region52: #{tpu_custom_call.1} parent=1 // pred_region
      %529 = dma.done [#allocation4], 128
    $region53: #{tpu_custom_call.1} parent=1 // pred_fallthru
      _
    %530 = vsyncpa [#allocation3], 1
    %531 = vsyncpa [#allocation6], 1
    %532 = vsyncpa [#allocation9], 1
    %533 = vsyncpa [#allocation4], 1

// kernel: tpu_custom_call.1
$region0: #{tpu_custom_call.1}
  #allocation0 [shape = 'u32[]', space=smem, size = 0x4, offset = 0x4, fixed_abs, tag = 'smem constant byte address 0x4 - core index']
  #allocation1 [shape = 'u32[144,128]{1,0:T(1,128)}', space=vmem, size = 0x12000, scoped, tag = 'internal scratch']
  %s0 = inlined_call_operand.hbm [shape: bf16[16,32], index: 0, kind: input, shape index: {}]
  %s1 = inlined_call_operand.hbm [shape: bf16[32,128], index: 1, kind: input, shape index: {}]
  %s2 = inlined_call_operand.vmem [shape: f32[1,128], index: 2, kind: input, shape index: {}]
  %s3 = inlined_call_operand.hbm [shape: bf16[2,128,128], index: 3, kind: input, shape index: {}]
  %s4 = inlined_call_operand.vmem [shape: f32[2,1,128], index: 4, kind: input, shape index: {}]
  %s5 = inlined_call_operand.hbm [shape: bf16[128,128], index: 5, kind: input, shape index: {}]
  %s6 = inlined_call_operand.vmem [shape: f32[1,128], index: 6, kind: input, shape index: {}]
  %s7 = inlined_call_operand.hbm [shape: bf16[16,128], index: 7, kind: output, shape index: {}]
  %s8 = sld [smem:[#allocation0]]
  $region54: #{tpu_custom_call.1} parent=0
    _
  %s10 = ssub.s32 1, %s8
  %s11 = scalar_select 0, %s10, %s8
  $region1: #{tpu_custom_call.1} parent=0
    #allocation2 [shape = 'u8[4096]{0}', space=vmem, size = 0x1000, scoped, tag = 'input window, operand 0, single buffered']
    #allocation3 [shape = 's32[1]{0}', space=sflag, size = 0x4, scoped, tag = 'scoped memory for tpu_custom_call.1']
    #allocation4 [shape = 's32[1]{0}', space=sflag, size = 0x4, scoped, tag = 'scoped memory for tpu_custom_call.1']
    #allocation5 [shape = 'u8[8192]{0}', space=vmem, size = 0x2000, scoped, tag = 'input window, operand 1, single buffered']
    #allocation6 [shape = 's32[1]{0}', space=sflag, size = 0x4, scoped, tag = 'scoped memory for tpu_custom_call.1']
    #allocation7 [shape = 'u8[65536]{0}', space=vmem, size = 0x10000, scoped, tag = 'input window, operand 3, single buffered']
    #allocation8 [shape = 'u8[32768]{0}', space=vmem, size = 0x8000, scoped, tag = 'input window, operand 5, single buffered']
    #allocation9 [shape = 's32[1]{0}', space=sflag, size = 0x4, scoped, tag = 'scoped memory for tpu_custom_call.1']
    #allocation10 [shape = 'u8[4096]{0}', space=vmem, size = 0x1000, scoped, tag = 'output window, operand 0, single buffered']
    %12 = vsyncpa [#allocation3], 0
    %13 = vsyncpa [#allocation6], 0
    %14 = vsyncpa [#allocation9], 0
    %15 = vsyncpa [#allocation4], 0
    // Predicated region
    $region2: #{tpu_custom_call.1} parent=1 // pred_check
      _
    $region3: #{tpu_custom_call.1} parent=1 // pred_check_branch
      %17 = sbr.rel (0) target = $region5
    $region4: #{tpu_custom_call.1} parent=1 // pred_region
      %s19 = ssub.s32 128, 128
      %20 = vsyncadd [#allocation3], %s19
      %s21 = sshll.u32 [#allocation2], 4
      %s22 = int_to_ptr.vmem [resolvable:$true] %s21
      %27 = dma.hbm_to_vmem [thread:$0]  %s0, 128, %s22, [#allocation3], 64, 64, 4
    $region5: #{tpu_custom_call.1} parent=1 // pred_fallthru
      _
    // Predicated region
    $region6: #{tpu_custom_call.1} parent=1 // pred_check
      _
    $region7: #{tpu_custom_call.1} parent=1 // pred_check_branch
      %29 = sbr.rel (0) target = $region9
    $region8: #{tpu_custom_call.1} parent=1 // pred_region
      %s31 = ssub.s32 256, 256
      %32 = vsyncadd [#allocation6], %s31
      %s33 = sshll.u32 [#allocation5], 4
      %s34 = int_to_ptr.vmem [resolvable:$true] %s33
      %39 = dma.hbm_to_vmem [thread:$0]  %s1, 256, %s34, [#allocation6], 64, 64, 4
    $region9: #{tpu_custom_call.1} parent=1 // pred_fallthru
      _
    // Predicated region
    $region10: #{tpu_custom_call.1} parent=1 // pred_check
      _
    $region11: #{tpu_custom_call.1} parent=1 // pred_check_branch
      %41 = sbr.rel (0) target = $region13
    $region12: #{tpu_custom_call.1} parent=1 // pred_region
      _
    $region13: #{tpu_custom_call.1} parent=1 // pred_fallthru
      _
    // Predicated region
    $region14: #{tpu_custom_call.1} parent=1 // pred_check
      _
    $region15: #{tpu_custom_call.1} parent=1 // pred_check_branch
      %43 = sbr.rel (0) target = $region17
    $region16: #{tpu_custom_call.1} parent=1 // pred_region
      %s45 = ssub.s32 2048, 2048
      %46 = vsyncadd [#allocation6], %s45
      %s47 = sshll.u32 [#allocation7], 4
      %s48 = int_to_ptr.vmem [resolvable:$true] %s47
      %53 = dma.hbm_to_vmem [thread:$0]  %s3, 2048, %s48, [#allocation6], 64, 64, 4
    $region17: #{tpu_custom_call.1} parent=1 // pred_fallthru
      _
    // Predicated region
    $region18: #{tpu_custom_call.1} parent=1 // pred_check
      _
    $region19: #{tpu_custom_call.1} parent=1 // pred_check_branch
      %55 = sbr.rel (0) target = $region21
    $region20: #{tpu_custom_call.1} parent=1 // pred_region
      _
    $region21: #{tpu_custom_call.1} parent=1 // pred_fallthru
      _
    // Predicated region
    $region22: #{tpu_custom_call.1} parent=1 // pred_check
      _
    $region23: #{tpu_custom_call.1} parent=1 // pred_check_branch
      %57 = sbr.rel (0) target = $region25
    $region24: #{tpu_custom_call.1} parent=1 // pred_region
      %s59 = ssub.s32 1024, 1024
      %60 = vsyncadd [#allocation9], %s59
      %s61 = sshll.u32 [#allocation8], 4
      %s62 = int_to_ptr.vmem [resolvable:$true] %s61
      %67 = dma.hbm_to_vmem [thread:$0]  %s5, 1024, %s62, [#allocation9], 64, 64, 4
    $region25: #{tpu_custom_call.1} parent=1 // pred_fallthru
      _
    // Predicated region
    $region26: #{tpu_custom_call.1} parent=1 // pred_check
      _
    $region27: #{tpu_custom_call.1} parent=1 // pred_check_branch
      %69 = sbr.rel (0) target = $region29
    $region28: #{tpu_custom_call.1} parent=1 // pred_region
      _
    $region29: #{tpu_custom_call.1} parent=1 // pred_fallthru
      _
    // Predicated region
    $region30: #{tpu_custom_call.1} parent=1 // pred_check
      _
    $region31: #{tpu_custom_call.1} parent=1 // pred_check_branch
      %71 = sbr.rel (0) target = $region33
    $region32: #{tpu_custom_call.1} parent=1 // pred_region
      %72 = dma.done [#allocation3], 128
    $region33: #{tpu_custom_call.1} parent=1 // pred_fallthru
      _
    // Predicated region
    $region34: #{tpu_custom_call.1} parent=1 // pred_check
      _
    $region35: #{tpu_custom_call.1} parent=1 // pred_check_branch
      %74 = sbr.rel (0) target = $region37
    $region36: #{tpu_custom_call.1} parent=1 // pred_region
      %75 = dma.done [#allocation6], 256
    $region37: #{tpu_custom_call.1} parent=1 // pred_fallthru
      _
    // Predicated region
    $region38: #{tpu_custom_call.1} parent=1 // pred_check
      _
    $region39: #{tpu_custom_call.1} parent=1 // pred_check_branch
      %77 = sbr.rel (0) target = $region41
    $region40: #{tpu_custom_call.1} parent=1 // pred_region
      %78 = dma.done [#allocation6], 2048
    $region41: #{tpu_custom_call.1} parent=1 // pred_fallthru
      _
    // Predicated region
    $region42: #{tpu_custom_call.1} parent=1 // pred_check
      _
    $region43: #{tpu_custom_call.1} parent=1 // pred_check_branch
      %80 = sbr.rel (0) target = $region45
    $region44: #{tpu_custom_call.1} parent=1 // pred_region
      %81 = dma.done [#allocation9], 1024
    $region45: #{tpu_custom_call.1} parent=1 // pred_fallthru
      _
    %v83 = vld [vmem:[#allocation2] sm:$0xf]
    %v84 = vld [vmem:[#allocation2 + $0x4] sm:$0xf]
    %v85 = vld [vmem:[#allocation5] sm:$0xf]
    %v86 = vld [vmem:[#allocation5 + $0x4] sm:$0xf]
    %v87 = vld [vmem:[#allocation5 + $0x8] sm:$0xf]
    %v88 = vld [vmem:[#allocation5 + $0xc] sm:$0xf]
    %v89 = vld [vmem:[%s2] sm:$0x1]
    %v91 = vlaneseq
    %v92 = vshrl.u32 %v91, 7
    %v93 = vsub.s32 0, %v92
    %v94 = vrot.slane %v89, %v93
    %v98 = vunpack.c.l.b16 %v83
    %v99 = vunpack.c.l.b16 %v84
    %v100 = vpack.c.b16 %v99, %v98
    %v105 = vunpack.c.l.b16 %v85
    %v106 = vunpack.c.l.b16 %v86
    %v107 = vunpack.c.l.b16 %v87
    %v108 = vunpack.c.l.b16 %v88
    %v109 = vpack.c.b16 %v106, %v105
    %v110 = vpack.c.b16 %v108, %v107
    %vm113 = vcmask 261120
    %v115 = vsel %vm113, %v100, 0
    %117 = vmatprep.subr.bf16.mxu0 0
    %118 = vmatpush1.bf16.msra.mxu0 %v109
    %119 = vmatprep.subr.bf16.mxu0 0
    %120 = vmatpush1.bf16.msra.mxu0 %v110
    %121 = vmatprep.subr.bf16.mxu0 0
    %122 = vmatpush1.bf16.msra.mxu0 0
    %123 = vmatprep.subr.bf16.mxu0 0
    %124 = vmatpush1.bf16.msra.mxu0 0
    %125 = vmatprep.subr.bf16.mxu0 0
    %126 = vmatpush1.bf16.msra.mxu0 0
    %127 = vmatprep.subr.bf16.mxu0 0
    %128 = vmatpush1.bf16.msra.mxu0 0
    %129 = vmatprep.subr.bf16.mxu0 0
    %130 = vmatpush1.bf16.msra.mxu0 0
    %131 = vmatprep.subr.bf16.mxu0 0
    %132 = vmatpush1.bf16.msra.mxu0 0
    %133 = vmatprep.subr.bf16.mxu0 0
    %134 = vmatpush1.bf16.msra.mxu0 0
    %135 = vmatprep.subr.bf16.mxu0 0
    %136 = vmatpush1.bf16.msra.mxu0 0
    %137 = vmatprep.subr.bf16.mxu0 0
    %138 = vmatpush1.bf16.msra.mxu0 0
    %139 = vmatprep.subr.bf16.mxu0 0
    %140 = vmatpush1.bf16.msra.mxu0 0
    %141 = vmatprep.subr.bf16.mxu0 0
    %142 = vmatpush1.bf16.msra.mxu0 0
    %143 = vmatprep.subr.bf16.mxu0 0
    %144 = vmatpush1.bf16.msra.mxu0 0
    %145 = vmatprep.subr.bf16.mxu0 0
    %146 = vmatpush1.bf16.msra.mxu0 0
    %147 = vmatprep.subr.bf16.mxu0 0
    %148 = vmatpush1.bf16.msra.mxu0 0
    %149 = vmatprep.mubr.bf16.mxu0 0
    %150 = vmatmul.mubr.bf16.gmra.mrb[0].mxu0 %v115
    %v151 = vpop.f32.mrb[0].mxu0
    %v152 = vadd.f32 %v94, %v151
    %v153 = vpop.f32.mrb[0].mxu0
    %v154 = vpop.f32.mrb[0].mxu0
    %v155 = vadd.f32 %v94, %v154
    %v156 = vpop.f32.mrb[0].mxu0
    %157 = vdwg.mxu0
    %v158 = vmax.f32 %v152, 0.0
    %v159 = vmax.f32 %v155, 0.0
    %v160 = vld [vmem:[#allocation7] sm:$0xf]
    %v161 = vld [vmem:[#allocation7 + $0x4] sm:$0xf]
    %v162 = vld [vmem:[#allocation7 + $0x8] sm:$0xf]
    %v163 = vld [vmem:[#allocation7 + $0xc] sm:$0xf]
    %v164 = vld [vmem:[#allocation7 + $0x10] sm:$0xf]
    %v165 = vld [vmem:[#allocation7 + $0x14] sm:$0xf]
    %v166 = vld [vmem:[#allocation7 + $0x18] sm:$0xf]
    %v167 = vld [vmem:[#allocation7 + $0x1c] sm:$0xf]
    %v168 = vld [vmem:[#allocation7 + $0x20] sm:$0xf]
    %v169 = vld [vmem:[#allocation7 + $0x24] sm:$0xf]
    %v170 = vld [vmem:[#allocation7 + $0x28] sm:$0xf]
    %v171 = vld [vmem:[#allocation7 + $0x2c] sm:$0xf]
    %v172 = vld [vmem:[#allocation7 + $0x30] sm:$0xf]
    %v173 = vld [vmem:[#allocation7 + $0x34] sm:$0xf]
    %v174 = vld [vmem:[#allocation7 + $0x38] sm:$0xf]
    %v175 = vld [vmem:[#allocation7 + $0x3c] sm:$0xf]
    %v176 = vld [vmem:[%s4] sm:$0x1]
    %v177 = vpack.c.bf16 %v159, %v158
    %v179 = vlaneseq
    %v180 = vshrl.u32 %v179, 7
    %v181 = vsub.s32 0, %v180
    %v182 = vrot.slane %v176, %v181
    %v200 = vunpack.c.l.b16 %v160
    %v201 = vunpack.c.l.b16 %v161
    %v202 = vunpack.c.l.b16 %v162
    %v203 = vunpack.c.l.b16 %v163
    %v204 = vunpack.c.l.b16 %v164
    %v205 = vunpack.c.l.b16 %v165
    %v206 = vunpack.c.l.b16 %v166
    %v207 = vunpack.c.l.b16 %v167
    %v208 = vunpack.c.l.b16 %v168
    %v209 = vunpack.c.l.b16 %v169
    %v210 = vunpack.c.l.b16 %v170
    %v211 = vunpack.c.l.b16 %v171
    %v212 = vunpack.c.l.b16 %v172
    %v213 = vunpack.c.l.b16 %v173
    %v214 = vunpack.c.l.b16 %v174
    %v215 = vunpack.c.l.b16 %v175
    %v216 = vpack.c.b16 %v201, %v200
    %v217 = vpack.c.b16 %v203, %v202
    %v218 = vpack.c.b16 %v205, %v204
    %v219 = vpack.c.b16 %v207, %v206
    %v220 = vpack.c.b16 %v209, %v208
    %v221 = vpack.c.b16 %v211, %v210
    %v222 = vpack.c.b16 %v213, %v212
    %v223 = vpack.c.b16 %v215, %v214
    %232 = vmatprep.subr.bf16.mxu0 0
    %233 = vmatpush1.bf16.msra.mxu0 %v216
    %234 = vmatprep.subr.bf16.mxu0 0
    %235 = vmatpush1.bf16.msra.mxu0 %v217
    %236 = vmatprep.subr.bf16.mxu0 0
    %237 = vmatpush1.bf16.msra.mxu0 %v218
    %238 = vmatprep.subr.bf16.mxu0 0
    %239 = vmatpush1.bf16.msra.mxu0 %v219
    %240 = vmatprep.subr.bf16.mxu0 0
    %241 = vmatpush1.bf16.msra.mxu0 %v220
    %242 = vmatprep.subr.bf16.mxu0 0
    %243 = vmatpush1.bf16.msra.mxu0 %v221
    %244 = vmatprep.subr.bf16.mxu0 0
    %245 = vmatpush1.bf16.msra.mxu0 %v222
    %246 = vmatprep.subr.bf16.mxu0 0
    %247 = vmatpush1.bf16.msra.mxu0 %v223
    %248 = vmatprep.subr.bf16.mxu0 0
    %249 = vmatpush1.bf16.msra.mxu0 0
    %250 = vmatprep.subr.bf16.mxu0 0
    %251 = vmatpush1.bf16.msra.mxu0 0
    %252 = vmatprep.subr.bf16.mxu0 0
    %253 = vmatpush1.bf16.msra.mxu0 0
    %254 = vmatprep.subr.bf16.mxu0 0
    %255 = vmatpush1.bf16.msra.mxu0 0
    %256 = vmatprep.subr.bf16.mxu0 0
    %257 = vmatpush1.bf16.msra.mxu0 0
    %258 = vmatprep.subr.bf16.mxu0 0
    %259 = vmatpush1.bf16.msra.mxu0 0
    %260 = vmatprep.subr.bf16.mxu0 0
    %261 = vmatpush1.bf16.msra.mxu0 0
    %262 = vmatprep.subr.bf16.mxu0 0
    %263 = vmatpush1.bf16.msra.mxu0 0
    %264 = vmatprep.mubr.bf16.mxu0 0
    %265 = vmatmul.mubr.bf16.gmra.mrb[0].mxu0 %v177
    %v266 = vpop.f32.mrb[0].mxu0
    %v267 = vadd.f32 %v182, %v266
    %v268 = vpop.f32.mrb[0].mxu0
    %v269 = vpop.f32.mrb[0].mxu0
    %v270 = vadd.f32 %v182, %v269
    %v271 = vpop.f32.mrb[0].mxu0
    %272 = vdwg.mxu0
    %v273 = vmax.f32 %v267, 0.0
    %v274 = vmax.f32 %v270, 0.0
    %s275 = scalar_lea.vmem [#allocation7], 64
    %v276 = vld [vmem:[%s275] sm:$0xf]
    %v277 = vld [vmem:[%s275 + $0x4] sm:$0xf]
    %v278 = vld [vmem:[%s275 + $0x8] sm:$0xf]
    %v279 = vld [vmem:[%s275 + $0xc] sm:$0xf]
    %v280 = vld [vmem:[%s275 + $0x10] sm:$0xf]
    %v281 = vld [vmem:[%s275 + $0x14] sm:$0xf]
    %v282 = vld [vmem:[%s275 + $0x18] sm:$0xf]
    %v283 = vld [vmem:[%s275 + $0x1c] sm:$0xf]
    %v284 = vld [vmem:[%s275 + $0x20] sm:$0xf]
    %v285 = vld [vmem:[%s275 + $0x24] sm:$0xf]
    %v286 = vld [vmem:[%s275 + $0x28] sm:$0xf]
    %v287 = vld [vmem:[%s275 + $0x2c] sm:$0xf]
    %v288 = vld [vmem:[%s275 + $0x30] sm:$0xf]
    %v289 = vld [vmem:[%s275 + $0x34] sm:$0xf]
    %v290 = vld [vmem:[%s275 + $0x38] sm:$0xf]
    %v291 = vld [vmem:[%s275 + $0x3c] sm:$0xf]
    %s292 = scalar_lea.vmem %s4, 1
    %v293 = vld [vmem:[%s292] sm:$0x1]
    %v294 = vpack.c.bf16 %v274, %v273
    %v296 = vlaneseq
    %v297 = vshrl.u32 %v296, 7
    %v298 = vsub.s32 0, %v297
    %v299 = vrot.slane %v293, %v298
    %v317 = vunpack.c.l.b16 %v276
    %v318 = vunpack.c.l.b16 %v277
    %v319 = vunpack.c.l.b16 %v278
    %v320 = vunpack.c.l.b16 %v279
    %v321 = vunpack.c.l.b16 %v280
    %v322 = vunpack.c.l.b16 %v281
    %v323 = vunpack.c.l.b16 %v282
    %v324 = vunpack.c.l.b16 %v283
    %v325 = vunpack.c.l.b16 %v284
    %v326 = vunpack.c.l.b16 %v285
    %v327 = vunpack.c.l.b16 %v286
    %v328 = vunpack.c.l.b16 %v287
    %v329 = vunpack.c.l.b16 %v288
    %v330 = vunpack.c.l.b16 %v289
    %v331 = vunpack.c.l.b16 %v290
    %v332 = vunpack.c.l.b16 %v291
    %v333 = vpack.c.b16 %v318, %v317
    %v334 = vpack.c.b16 %v320, %v319
    %v335 = vpack.c.b16 %v322, %v321
    %v336 = vpack.c.b16 %v324, %v323
    %v337 = vpack.c.b16 %v326, %v325
    %v338 = vpack.c.b16 %v328, %v327
    %v339 = vpack.c.b16 %v330, %v329
    %v340 = vpack.c.b16 %v332, %v331
    %349 = vmatprep.subr.bf16.mxu0 0
    %350 = vmatpush1.bf16.msra.mxu0 %v333
    %351 = vmatprep.subr.bf16.mxu0 0
    %352 = vmatpush1.bf16.msra.mxu0 %v334
    %353 = vmatprep.subr.bf16.mxu0 0
    %354 = vmatpush1.bf16.msra.mxu0 %v335
    %355 = vmatprep.subr.bf16.mxu0 0
    %356 = vmatpush1.bf16.msra.mxu0 %v336
    %357 = vmatprep.subr.bf16.mxu0 0
    %358 = vmatpush1.bf16.msra.mxu0 %v337
    %359 = vmatprep.subr.bf16.mxu0 0
    %360 = vmatpush1.bf16.msra.mxu0 %v338
    %361 = vmatprep.subr.bf16.mxu0 0
    %362 = vmatpush1.bf16.msra.mxu0 %v339
    %363 = vmatprep.subr.bf16.mxu0 0
    %364 = vmatpush1.bf16.msra.mxu0 %v340
    %365 = vmatprep.subr.bf16.mxu0 0
    %366 = vmatpush1.bf16.msra.mxu0 0
    %367 = vmatprep.subr.bf16.mxu0 0
    %368 = vmatpush1.bf16.msra.mxu0 0
    %369 = vmatprep.subr.bf16.mxu0 0
    %370 = vmatpush1.bf16.msra.mxu0 0
    %371 = vmatprep.subr.bf16.mxu0 0
    %372 = vmatpush1.bf16.msra.mxu0 0
    %373 = vmatprep.subr.bf16.mxu0 0
    %374 = vmatpush1.bf16.msra.mxu0 0
    %375 = vmatprep.subr.bf16.mxu0 0
    %376 = vmatpush1.bf16.msra.mxu0 0
    %377 = vmatprep.subr.bf16.mxu0 0
    %378 = vmatpush1.bf16.msra.mxu0 0
    %379 = vmatprep.subr.bf16.mxu0 0
    %380 = vmatpush1.bf16.msra.mxu0 0
    %381 = vmatprep.mubr.bf16.mxu0 0
    %382 = vmatmul.mubr.bf16.gmra.mrb[0].mxu0 %v294
    %v383 = vpop.f32.mrb[0].mxu0
    %v384 = vadd.f32 %v299, %v383
    %v385 = vpop.f32.mrb[0].mxu0
    %v386 = vpop.f32.mrb[0].mxu0
    %v387 = vadd.f32 %v299, %v386
    %v388 = vpop.f32.mrb[0].mxu0
    %389 = vdwg.mxu0
    %v390 = vmax.f32 %v384, 0.0
    %v391 = vmax.f32 %v387, 0.0
    %v392 = vpack.c.bf16 %v391, %v390
    %v393 = vld [vmem:[#allocation8] sm:$0xf]
    %v394 = vld [vmem:[#allocation8 + $0x4] sm:$0xf]
    %v395 = vld [vmem:[#allocation8 + $0x8] sm:$0xf]
    %v396 = vld [vmem:[#allocation8 + $0xc] sm:$0xf]
    %v397 = vld [vmem:[#allocation8 + $0x10] sm:$0xf]
    %v398 = vld [vmem:[#allocation8 + $0x14] sm:$0xf]
    %v399 = vld [vmem:[#allocation8 + $0x18] sm:$0xf]
    %v400 = vld [vmem:[#allocation8 + $0x1c] sm:$0xf]
    %v401 = vld [vmem:[#allocation8 + $0x20] sm:$0xf]
    %v402 = vld [vmem:[#allocation8 + $0x24] sm:$0xf]
    %v403 = vld [vmem:[#allocation8 + $0x28] sm:$0xf]
    %v404 = vld [vmem:[#allocation8 + $0x2c] sm:$0xf]
    %v405 = vld [vmem:[#allocation8 + $0x30] sm:$0xf]
    %v406 = vld [vmem:[#allocation8 + $0x34] sm:$0xf]
    %v407 = vld [vmem:[#allocation8 + $0x38] sm:$0xf]
    %v408 = vld [vmem:[#allocation8 + $0x3c] sm:$0xf]
    %v409 = vld [vmem:[%s6] sm:$0x1]
    %v411 = vlaneseq
    %v412 = vshrl.u32 %v411, 7
    %v413 = vsub.s32 0, %v412
    %v414 = vrot.slane %v409, %v413
    %v432 = vunpack.c.l.b16 %v393
    %v433 = vunpack.c.l.b16 %v394
    %v434 = vunpack.c.l.b16 %v395
    %v435 = vunpack.c.l.b16 %v396
    %v436 = vunpack.c.l.b16 %v397
    %v437 = vunpack.c.l.b16 %v398
    %v438 = vunpack.c.l.b16 %v399
    %v439 = vunpack.c.l.b16 %v400
    %v440 = vunpack.c.l.b16 %v401
    %v441 = vunpack.c.l.b16 %v402
    %v442 = vunpack.c.l.b16 %v403
    %v443 = vunpack.c.l.b16 %v404
    %v444 = vunpack.c.l.b16 %v405
    %v445 = vunpack.c.l.b16 %v406
    %v446 = vunpack.c.l.b16 %v407
    %v447 = vunpack.c.l.b16 %v408
    %v448 = vpack.c.b16 %v433, %v432
    %v449 = vpack.c.b16 %v435, %v434
    %v450 = vpack.c.b16 %v437, %v436
    %v451 = vpack.c.b16 %v439, %v438
    %v452 = vpack.c.b16 %v441, %v440
    %v453 = vpack.c.b16 %v443, %v442
    %v454 = vpack.c.b16 %v445, %v444
    %v455 = vpack.c.b16 %v447, %v446
    %464 = vmatprep.subr.bf16.mxu0 0
    %465 = vmatpush1.bf16.msra.mxu0 %v448
    %466 = vmatprep.subr.bf16.mxu0 0
    %467 = vmatpush1.bf16.msra.mxu0 %v449
    %468 = vmatprep.subr.bf16.mxu0 0
    %469 = vmatpush1.bf16.msra.mxu0 %v450
    %470 = vmatprep.subr.bf16.mxu0 0
    %471 = vmatpush1.bf16.msra.mxu0 %v451
    %472 = vmatprep.subr.bf16.mxu0 0
    %473 = vmatpush1.bf16.msra.mxu0 %v452
    %474 = vmatprep.subr.bf16.mxu0 0
    %475 = vmatpush1.bf16.msra.mxu0 %v453
    %476 = vmatprep.subr.bf16.mxu0 0
    %477 = vmatpush1.bf16.msra.mxu0 %v454
    %478 = vmatprep.subr.bf16.mxu0 0
    %479 = vmatpush1.bf16.msra.mxu0 %v455
    %480 = vmatprep.subr.bf16.mxu0 0
    %481 = vmatpush1.bf16.msra.mxu0 0
    %482 = vmatprep.subr.bf16.mxu0 0
    %483 = vmatpush1.bf16.msra.mxu0 0
    %484 = vmatprep.subr.bf16.mxu0 0
    %485 = vmatpush1.bf16.msra.mxu0 0
    %486 = vmatprep.subr.bf16.mxu0 0
    %487 = vmatpush1.bf16.msra.mxu0 0
    %488 = vmatprep.subr.bf16.mxu0 0
    %489 = vmatpush1.bf16.msra.mxu0 0
    %490 = vmatprep.subr.bf16.mxu0 0
    %491 = vmatpush1.bf16.msra.mxu0 0
    %492 = vmatprep.subr.bf16.mxu0 0
    %493 = vmatpush1.bf16.msra.mxu0 0
    %494 = vmatprep.subr.bf16.mxu0 0
    %495 = vmatpush1.bf16.msra.mxu0 0
    %496 = vmatprep.mubr.bf16.mxu0 0
    %497 = vmatmul.mubr.bf16.gmra.mrb[0].mxu0 %v392
    %v498 = vpop.f32.mrb[0].mxu0
    %v499 = vadd.f32 %v414, %v498
    %v500 = vpop.f32.mrb[0].mxu0
    %v501 = vpop.f32.mrb[0].mxu0
    %v502 = vadd.f32 %v414, %v501
    %v503 = vpop.f32.mrb[0].mxu0
    %504 = vdwg.mxu0
    %v505 = vpack.c.bf16 %v502, %v499
    %v507 = vunpack.c.l.b16 %v505
    %v508 = vunpack.c.h.b16 %v505
    %v509 = vpack.c.b16 %v507, %v507
    %v510 = vpack.c.b16 %v508, %v508
    %513 = vst [vmem:[#allocation10] sm:$0xf] %v509
    %514 = vst [vmem:[#allocation10 + $0x4] sm:$0xf] %v510
    // Predicated region
    $region46: #{tpu_custom_call.1} parent=1 // pred_check
      _
    $region47: #{tpu_custom_call.1} parent=1 // pred_check_branch
      %516 = sbr.rel (0) target = $region49
    $region48: #{tpu_custom_call.1} parent=1 // pred_region
      %s518 = ssub.s32 128, 128
      %519 = vsyncadd [#allocation4], %s518
      %s520 = sshll.u32 [#allocation10], 4
      %s521 = int_to_ptr.vmem [resolvable:$true] %s520
      %526 = dma.vmem_to_hbm [thread:$0]  %s521, 128, %s7, [#allocation4], 64, 64, 4
    $region49: #{tpu_custom_call.1} parent=1 // pred_fallthru
      _
    // Predicated region
    $region50: #{tpu_custom_call.1} parent=1 // pred_check
      _
    $region51: #{tpu_custom_call.1} parent=1 // pred_check_branch
      %528 = sbr.rel (0) target = $region53
    $region52: #{tpu_custom_call.1} parent=1 // pred_region
      %529 = dma.done [#allocation4], 128
    $region53: #{tpu_custom_call.1} parent=1 // pred_fallthru
      _
    %530 = vsyncpa [#allocation3], 1
    %531 = vsyncpa [#allocation6], 1
    %532 = vsyncpa [#allocation9], 1
    %533 = vsyncpa [#allocation4], 1

</llo_original>
